<compile_context>
chip_gen: v7x
topology: tpu7x:2x2x1
jax: 0.10.0
libtpu: 0.0.40
codegen_flags: <defaults>
</compile_context>

<pallas_src>
import functools

import numpy as np
import jax
import jax.numpy as jnp
from jax.experimental import pallas as pl
from jax.experimental.pallas import tpu as pltpu

_HALO_MIN = 128


def build_sinc_filter(kernel_size, cutoff):
    # Identical to the PyTorch reference (including its constant-window quirk).
    assert kernel_size % 2 == 1
    M = kernel_size - 1
    filt = np.zeros(kernel_size, dtype=np.float32)
    for i in range(kernel_size):
        if i == M // 2:
            filt[i] = 2 * np.pi * cutoff
        else:
            filt[i] = (np.sin(2 * np.pi * cutoff * (i - M // 2)) / (i - M // 2)
                       * (0.42 - 0.5 * np.cos(2 * np.pi * i / M)
                          + 0.08 * np.cos(4 * np.pi * M)))
    return filt / np.sum(filt)


def _round_up(a, b):
    return -(-a // b) * b


def _choose_tile(n_cols, rows_in, rows_out, halo,
                 max_tile=1024, vmem_budget=8 * 1024 * 1024):
    """Largest 128-multiple output tile that fits a conservative VMEM budget."""
    tl = 128
    while (tl * 2 <= max_tile and tl < n_cols and
           8 * (rows_in * (2 * tl + halo) + rows_out * 2 * tl) <= vmem_budget):
        tl *= 2
    if halo > tl:
        tl = halo
    return _round_up(tl, halo)


# ---------------------------------------------------------------------------
# The Pallas kernel: unit-stride depthwise correlation on one lane-dense tile.
# ---------------------------------------------------------------------------
def _dw_corr_kernel(xa_ref, xb_ref, f_ref, o_ref, *, C, R, Q, TL, mode):
    """xa: (1, rows_in, TL) main tile, xb: (1, rows_in, halo) next-chunk halo.

    mode == 'down': rows_in = R*C polyphase rows, one Q-tap filter per row,
                    the R phase groups are summed  -> output rows = C.
    mode == 'up'  : rows_in = C input rows, R filters (one per output phase)
                    per row                         -> output rows = R*C.
    """
    xw = jnp.concatenate([xa_ref[0], xb_ref[0]], axis=-1).astype(jnp.float32)
    f = f_ref[...].astype(jnp.float32)

    if mode == 'down':
        acc = jnp.zeros((C, TL), jnp.float32)
        for r in range(R):                      # static unroll, R = stride
            fr = f[r * C:(r + 1) * C]           # (C, Q)
            xr = xw[r * C:(r + 1) * C]          # (C, TL + halo)
            for q in range(Q):                  # static unroll, Q = ceil(K/R)
                acc = acc + fr[:, q:q + 1] * xr[:, q:q + TL]
        o_ref[0] = acc.astype(o_ref.dtype)
    else:  # 'up'
        shifted = [xw[:, q:q + TL] for q in range(Q)]   # hoist lane shifts
        outs = []
        for r in range(R):
            fr = f[r * C:(r + 1) * C]           # (C, Q)
            acc = jnp.zeros((C, TL), jnp.float32)
            for q in range(Q):
                acc = acc + fr[:, q:q + 1] * shifted[q]
            outs.append(acc)
        o_ref[0] = jnp.concatenate(outs, axis=0).astype(o_ref.dtype)


def _call_dw_corr(x_rows, fp, rows_out, n_l, TL, halo, *, C, R, Q, mode):
    """Grid over (batch, L tiles); x is passed twice (main tile + halo strip)."""
    B, rows_in, _ = x_rows.shape
    assert TL % halo == 0
    hb = TL // halo
    kernel = functools.partial(_dw_corr_kernel, C=C, R=R, Q=Q, TL=TL, mode=mode)
    return pl.pallas_call(
        kernel,
        out_shape=jax.ShapeDtypeStruct((B, rows_out, n_l * TL), x_rows.dtype),
        grid=(B, n_l),
        in_specs=[
            pl.BlockSpec((1, rows_in, TL), lambda b, j: (b, 0, j)),
            pl.BlockSpec((1, rows_in, halo), lambda b, j: (b, 0, (j + 1) * hb)),
            pl.BlockSpec(fp.shape, lambda b, j: (0, 0)),   # resident filter
        ],
        out_specs=pl.BlockSpec((1, rows_out, TL), lambda b, j: (b, 0, j)),
        compiler_params=pltpu.CompilerParams(
            dimension_semantics=("parallel", "parallel"),
            vmem_limit_bytes=64 * 1024 * 1024),
    )(x_rows, x_rows, fp)


# ---------------------------------------------------------------------------
# Downsampling path (transpose=False): strided depthwise conv1d.
# ---------------------------------------------------------------------------
def _resample_down(x, filt, stride, padding):
    B, C, L = x.shape
    K = filt.shape[-1]
    s = stride
    f2 = filt.reshape(C, K)

    if padding == 'reflect':
        p = (K - 1) // 2
        xp = jnp.pad(x, ((0, 0), (0, 0), (p, p)), mode='reflect')
    else:
        xp = x
    Lp = xp.shape[2]
    L_out = (Lp - K) // s + 1
    assert L_out > 0

    Q = -(-K // s)                                  # taps per phase
    halo = max(_HALO_MIN, _round_up(max(Q - 1, 1), 128))
    TL = _choose_tile(L_out, s * C, C, halo)
    n_l = -(-L_out // TL)
    M = max(n_l * TL + halo, -(-Lp // s))           # phase-domain columns

    # Zero-pad and split into `s` polyphase rows: x_ph[b, r*C+c, m] = xp[b, c, m*s+r].
    xpp = jnp.pad(xp, ((0, 0), (0, 0), (0, M * s - Lp)))
    x_ph = xpp.reshape(B, C, M, s).transpose(0, 3, 1, 2).reshape(B, s * C, M)

    # Polyphase filter: fp[r*C+c, q] = f[c, q*s+r] (zero-padded beyond K).
    f_pad = jnp.pad(f2, ((0, 0), (0, Q * s - K)))
    fp = f_pad.reshape(C, Q, s).transpose(2, 0, 1).reshape(s * C, Q)

    out = _call_dw_corr(x_ph, fp, C, n_l, TL, halo, C=C, R=s, Q=Q, mode='down')
    return out[:, :, :L_out]


# ---------------------------------------------------------------------------
# Upsampling path (transpose=True): depthwise ConvTranspose1d + center crop.
# ---------------------------------------------------------------------------
def _resample_up(x, filt, stride, padding):
    B, C, L = x.shape
    K = filt.shape[-1]
    s = stride
    f2 = filt.reshape(C, K)

    if padding == 'reflect':
        p = (K - 1) // 2
        xp = jnp.pad(x, ((0, 0), (0, 0), (p, p)), mode='reflect')
    else:
        xp = x
    Lp = xp.shape[2]
    Ly = (Lp - 1) * s + K                            # conv_transpose1d length

    Q = -(-K // s)
    M_y = Lp + Q - 1                                 # phase-domain output length
    halo = max(_HALO_MIN, _round_up(max(Q - 1, 1), 128))
    TL = _choose_tile(M_y, C, s * C, halo)
    n_l = -(-M_y // TL)
    M_in = max(n_l * TL + halo, Lp + Q - 1)

    # Left-pad Q-1 zeros (flipped-filter correlation), right-pad with zeros.
    x_lp = jnp.pad(xp, ((0, 0), (0, 0), (Q - 1, M_in - (Lp + Q - 1))))

    # Per-output-phase flipped filters: fp[r*C+c, q'] = f[c, (Q-1-q')*s + r].
    f_pad = jnp.pad(f2, ((0, 0), (0, Q * s - K)))
    fp = f_pad.reshape(C, Q, s)[:, ::-1, :].transpose(2, 0, 1).reshape(s * C, Q)

    corr = _call_dw_corr(x_lp, fp, s * C, n_l, TL, halo, C=C, R=s, Q=Q, mode='up')

    # Interleave phases: y[b, c, m*s + r] = corr[b, r*C + c, m], then crop.
    Mc = n_l * TL
    y = corr.reshape(B, s, C, Mc).transpose(0, 2, 3, 1).reshape(B, C, Mc * s)
    y = y[:, :, :Ly]

    expected = (L - 1) * s + 1
    if padding == 'valid':
        expected = expected - K + 1
    diff = Ly - expected
    if diff > 0:
        assert diff % 2 == 0
        y = y[:, :, diff // 2: Ly - diff // 2]
    return y


class Resample1d:
    """Pallas-TPU forward of waveunet's Resample1d (depthwise sinc resampler)."""

    def __init__(self, channels, kernel_size, stride, transpose=False,
                 padding='reflect', trainable=False):
        assert kernel_size > 2
        assert (kernel_size - 1) % 2 == 0
        assert padding in ('reflect', 'valid')
        self.channels = channels
        self.kernel_size = kernel_size
        self.stride = stride
        self.transpose = transpose
        self.padding = padding
        cutoff = 0.5 / stride
        filt = build_sinc_filter(kernel_size, cutoff).astype(np.float32)
        # (C, 1, K) exactly like the PyTorch parameter.  `trainable` only marks
        # the filter as learnable; the forward math is identical, so it is a no-op here.
        self.filter = jnp.asarray(np.repeat(filt[None, None, :], channels, axis=0))
        self._forward = jax.jit(self._forward_impl)

    def _forward_impl(self, x):
        if self.transpose:
            return _resample_up(x, self.filter, self.stride, self.padding)
        return _resample_down(x, self.filter, self.stride, self.padding)

    def __call__(self, x):
        return self._forward(x)


# ---------------------------------------------------------------------------
# Pure-numpy reference mirroring the PyTorch module exactly.
# ---------------------------------------------------------------------------
def _reference_forward(x, filt, stride, transpose, padding):
    B, C, L = x.shape
    K = filt.shape[1]
    if padding == 'reflect':
        p = (K - 1) // 2
        xp = np.pad(x, ((0, 0), (0, 0), (p, p)), mode='reflect')
    else:
        xp = x
    Lp = xp.shape[2]
    if not transpose:
        L_out = (Lp - K) // stride + 1
        out = np.zeros((B, C, L_out), np.float64)
        for l in range(L_out):
            seg = xp[:, :, l * stride: l * stride + K]
            out[:, :, l] = np.sum(seg * filt[None, :, :], axis=2)
        return out.astype(np.float32)
    else:
        Ly = (Lp - 1) * stride + K
        y = np.zeros((B, C, Ly), np.float64)
        for l in range(Lp):
            y[:, :, l * stride: l * stride + K] += xp[:, :, l:l + 1] * filt[None, :, :]
        expected = (L - 1) * stride + 1
        if padding == 'valid':
            expected = expected - K + 1
        diff = Ly - expected
        if diff > 0:
            assert diff % 2 == 0
            y = y[:, :, diff // 2: Ly - diff // 2]
        return y.astype(np.float32)


if __name__ == "__main__":
    key = jax.random.PRNGKey(0)
    B = 2
    configs = [
        dict(channels=4, kernel_size=15, stride=2, transpose=False, padding='reflect', length=33),
        dict(channels=4, kernel_size=15, stride=2, transpose=False, padding='valid',   length=33),
        dict(channels=8, kernel_size=7,  stride=3, transpose=False, padding='reflect', length=31),
        dict(channels=4, kernel_size=15, stride=2, transpose=True,  padding='reflect', length=17),
        dict(channels=4, kernel_size=15, stride=2, transpose=True,  padding='valid',   length=17),
        # multi-tile cases (exercise the halo block and >1 grid step along L)
        dict(channels=4, kernel_size=15, stride=2, transpose=False, padding='reflect', length=2505),
        dict(channels=4, kernel_size=15, stride=2, transpose=True,  padding='reflect', length=1100),
    ]
    for i, cfg in enumerate(configs):
        k = jax.random.fold_in(key, i)
        x = jax.random.normal(k, (B, cfg['channels'], cfg['length']), jnp.float32)
        layer = Resample1d(cfg['channels'], cfg['kernel_size'], cfg['stride'],
                           transpose=cfg['transpose'], padding=cfg['padding'])
        out = jax.block_until_ready(layer(x))
        ref = _reference_forward(np.asarray(x),
                                 np.asarray(layer.filter)[:, 0, :],
                                 cfg['stride'], cfg['transpose'], cfg['padding'])
        assert out.shape == ref.shape, (cfg, out.shape, ref.shape)
        err = float(np.max(np.abs(np.asarray(out) - ref)))
        assert err < 1e-4, (cfg, err)
    print("KERNEL_OK")
</pallas_src>

<mosaic_0001>
module attributes {stable_mosaic.version = 11 : i64} {
  func.func @_dw_corr_kernel(%arg0: i32, %arg1: i32, %arg2: memref<1x8x128xf32, #tpu.memory_space<vmem>>, %arg3: memref<1x8x128xf32, #tpu.memory_space<vmem>>, %arg4: memref<8x8xf32, #tpu.memory_space<vmem>>, %arg5: memref<1x4x128xf32, #tpu.memory_space<vmem>>) attributes {dimension_semantics = [#tpu.dimension_semantics<parallel>, #tpu.dimension_semantics<parallel>], iteration_bounds = array<i64: 2, 1>, scalar_prefetch = 0 : i64, scratch_operands = 0 : i64, tpu.core_type = #tpu.core_type<tc>, window_params = [{transform_indices = @transform_0, window_bounds = array<i64: 1, 8, 128>}, {transform_indices = @transform_1, window_bounds = array<i64: 1, 8, 128>}, {pipeline_mode = #tpu.pipeline_mode<synchronous>, transform_indices = @transform_2, window_bounds = array<i64: 8, 8>}, {transform_indices = @transform_3, window_bounds = array<i64: 1, 4, 128>}]} {
    %c0 = arith.constant 0 : index
    %c0_0 = arith.constant 0 : index
    %c0_1 = arith.constant 0 : index
    %0 = vector.load %arg2[%c0, %c0_0, %c0_1] : memref<1x8x128xf32, #tpu.memory_space<vmem>>, vector<1x8x128xf32>
    %1 = vector.shape_cast %0 : vector<1x8x128xf32> to vector<8x128xf32>
    %c0_2 = arith.constant 0 : index
    %c0_3 = arith.constant 0 : index
    %c0_4 = arith.constant 0 : index
    %2 = vector.load %arg3[%c0_2, %c0_3, %c0_4] : memref<1x8x128xf32, #tpu.memory_space<vmem>>, vector<1x8x128xf32>
    %3 = vector.shape_cast %2 : vector<1x8x128xf32> to vector<8x128xf32>
    %4 = tpu.concatenate %1, %3 in 1 : vector<8x128xf32>, vector<8x128xf32> -> vector<8x256xf32>
    %c0_5 = arith.constant 0 : index
    %c0_6 = arith.constant 0 : index
    %5 = vector.load %arg4[%c0_5, %c0_6] : memref<8x8xf32, #tpu.memory_space<vmem>>, vector<8x8xf32>
    %cst = arith.constant 0.000000e+00 : f32
    %6 = vector.broadcast %cst : f32 to vector<4x128xf32>
    %7 = vector.extract_strided_slice %5 {offsets = [0, 0], sizes = [4, 8], strides = [1, 1]} : vector<8x8xf32> to vector<4x8xf32>
    %8 = vector.extract_strided_slice %4 {offsets = [0, 0], sizes = [4, 256], strides = [1, 1]} : vector<8x256xf32> to vector<4x256xf32>
    %9 = vector.extract_strided_slice %7 {offsets = [0, 0], sizes = [4, 1], strides = [1, 1]} : vector<4x8xf32> to vector<4x1xf32>
    %10 = vector.extract_strided_slice %8 {offsets = [0, 0], sizes = [4, 128], strides = [1, 1]} : vector<4x256xf32> to vector<4x128xf32>
    %11 = vector.broadcast %9 : vector<4x1xf32> to vector<4x128xf32>
    %12 = arith.mulf %11, %10 : vector<4x128xf32>
    %13 = arith.addf %6, %12 : vector<4x128xf32>
    %14 = vector.extract_strided_slice %7 {offsets = [0, 1], sizes = [4, 1], strides = [1, 1]} : vector<4x8xf32> to vector<4x1xf32>
    %15 = vector.extract_strided_slice %8 {offsets = [0, 1], sizes = [4, 128], strides = [1, 1]} : vector<4x256xf32> to vector<4x128xf32>
    %16 = vector.broadcast %14 : vector<4x1xf32> to vector<4x128xf32>
    %17 = arith.mulf %16, %15 : vector<4x128xf32>
    %18 = arith.addf %13, %17 : vector<4x128xf32>
    %19 = vector.extract_strided_slice %7 {offsets = [0, 2], sizes = [4, 1], strides = [1, 1]} : vector<4x8xf32> to vector<4x1xf32>
    %20 = vector.extract_strided_slice %8 {offsets = [0, 2], sizes = [4, 128], strides = [1, 1]} : vector<4x256xf32> to vector<4x128xf32>
    %21 = vector.broadcast %19 : vector<4x1xf32> to vector<4x128xf32>
    %22 = arith.mulf %21, %20 : vector<4x128xf32>
    %23 = arith.addf %18, %22 : vector<4x128xf32>
    %24 = vector.extract_strided_slice %7 {offsets = [0, 3], sizes = [4, 1], strides = [1, 1]} : vector<4x8xf32> to vector<4x1xf32>
    %25 = vector.extract_strided_slice %8 {offsets = [0, 3], sizes = [4, 128], strides = [1, 1]} : vector<4x256xf32> to vector<4x128xf32>
    %26 = vector.broadcast %24 : vector<4x1xf32> to vector<4x128xf32>
    %27 = arith.mulf %26, %25 : vector<4x128xf32>
    %28 = arith.addf %23, %27 : vector<4x128xf32>
    %29 = vector.extract_strided_slice %7 {offsets = [0, 4], sizes = [4, 1], strides = [1, 1]} : vector<4x8xf32> to vector<4x1xf32>
    %30 = vector.extract_strided_slice %8 {offsets = [0, 4], sizes = [4, 128], strides = [1, 1]} : vector<4x256xf32> to vector<4x128xf32>
    %31 = vector.broadcast %29 : vector<4x1xf32> to vector<4x128xf32>
    %32 = arith.mulf %31, %30 : vector<4x128xf32>
    %33 = arith.addf %28, %32 : vector<4x128xf32>
    %34 = vector.extract_strided_slice %7 {offsets = [0, 5], sizes = [4, 1], strides = [1, 1]} : vector<4x8xf32> to vector<4x1xf32>
    %35 = vector.extract_strided_slice %8 {offsets = [0, 5], sizes = [4, 128], strides = [1, 1]} : vector<4x256xf32> to vector<4x128xf32>
    %36 = vector.broadcast %34 : vector<4x1xf32> to vector<4x128xf32>
    %37 = arith.mulf %36, %35 : vector<4x128xf32>
    %38 = arith.addf %33, %37 : vector<4x128xf32>
    %39 = vector.extract_strided_slice %7 {offsets = [0, 6], sizes = [4, 1], strides = [1, 1]} : vector<4x8xf32> to vector<4x1xf32>
    %40 = vector.extract_strided_slice %8 {offsets = [0, 6], sizes = [4, 128], strides = [1, 1]} : vector<4x256xf32> to vector<4x128xf32>
    %41 = vector.broadcast %39 : vector<4x1xf32> to vector<4x128xf32>
    %42 = arith.mulf %41, %40 : vector<4x128xf32>
    %43 = arith.addf %38, %42 : vector<4x128xf32>
    %44 = vector.extract_strided_slice %7 {offsets = [0, 7], sizes = [4, 1], strides = [1, 1]} : vector<4x8xf32> to vector<4x1xf32>
    %45 = vector.extract_strided_slice %8 {offsets = [0, 7], sizes = [4, 128], strides = [1, 1]} : vector<4x256xf32> to vector<4x128xf32>
    %46 = vector.broadcast %44 : vector<4x1xf32> to vector<4x128xf32>
    %47 = arith.mulf %46, %45 : vector<4x128xf32>
    %48 = arith.addf %43, %47 : vector<4x128xf32>
    %49 = vector.extract_strided_slice %5 {offsets = [4, 0], sizes = [4, 8], strides = [1, 1]} : vector<8x8xf32> to vector<4x8xf32>
    %50 = vector.extract_strided_slice %4 {offsets = [4, 0], sizes = [4, 256], strides = [1, 1]} : vector<8x256xf32> to vector<4x256xf32>
    %51 = vector.extract_strided_slice %49 {offsets = [0, 0], sizes = [4, 1], strides = [1, 1]} : vector<4x8xf32> to vector<4x1xf32>
    %52 = vector.extract_strided_slice %50 {offsets = [0, 0], sizes = [4, 128], strides = [1, 1]} : vector<4x256xf32> to vector<4x128xf32>
    %53 = vector.broadcast %51 : vector<4x1xf32> to vector<4x128xf32>
    %54 = arith.mulf %53, %52 : vector<4x128xf32>
    %55 = arith.addf %48, %54 : vector<4x128xf32>
    %56 = vector.extract_strided_slice %49 {offsets = [0, 1], sizes = [4, 1], strides = [1, 1]} : vector<4x8xf32> to vector<4x1xf32>
    %57 = vector.extract_strided_slice %50 {offsets = [0, 1], sizes = [4, 128], strides = [1, 1]} : vector<4x256xf32> to vector<4x128xf32>
    %58 = vector.broadcast %56 : vector<4x1xf32> to vector<4x128xf32>
    %59 = arith.mulf %58, %57 : vector<4x128xf32>
    %60 = arith.addf %55, %59 : vector<4x128xf32>
    %61 = vector.extract_strided_slice %49 {offsets = [0, 2], sizes = [4, 1], strides = [1, 1]} : vector<4x8xf32> to vector<4x1xf32>
    %62 = vector.extract_strided_slice %50 {offsets = [0, 2], sizes = [4, 128], strides = [1, 1]} : vector<4x256xf32> to vector<4x128xf32>
    %63 = vector.broadcast %61 : vector<4x1xf32> to vector<4x128xf32>
    %64 = arith.mulf %63, %62 : vector<4x128xf32>
    %65 = arith.addf %60, %64 : vector<4x128xf32>
    %66 = vector.extract_strided_slice %49 {offsets = [0, 3], sizes = [4, 1], strides = [1, 1]} : vector<4x8xf32> to vector<4x1xf32>
    %67 = vector.extract_strided_slice %50 {offsets = [0, 3], sizes = [4, 128], strides = [1, 1]} : vector<4x256xf32> to vector<4x128xf32>
    %68 = vector.broadcast %66 : vector<4x1xf32> to vector<4x128xf32>
    %69 = arith.mulf %68, %67 : vector<4x128xf32>
    %70 = arith.addf %65, %69 : vector<4x128xf32>
    %71 = vector.extract_strided_slice %49 {offsets = [0, 4], sizes = [4, 1], strides = [1, 1]} : vector<4x8xf32> to vector<4x1xf32>
    %72 = vector.extract_strided_slice %50 {offsets = [0, 4], sizes = [4, 128], strides = [1, 1]} : vector<4x256xf32> to vector<4x128xf32>
    %73 = vector.broadcast %71 : vector<4x1xf32> to vector<4x128xf32>
    %74 = arith.mulf %73, %72 : vector<4x128xf32>
    %75 = arith.addf %70, %74 : vector<4x128xf32>
    %76 = vector.extract_strided_slice %49 {offsets = [0, 5], sizes = [4, 1], strides = [1, 1]} : vector<4x8xf32> to vector<4x1xf32>
    %77 = vector.extract_strided_slice %50 {offsets = [0, 5], sizes = [4, 128], strides = [1, 1]} : vector<4x256xf32> to vector<4x128xf32>
    %78 = vector.broadcast %76 : vector<4x1xf32> to vector<4x128xf32>
    %79 = arith.mulf %78, %77 : vector<4x128xf32>
    %80 = arith.addf %75, %79 : vector<4x128xf32>
    %81 = vector.extract_strided_slice %49 {offsets = [0, 6], sizes = [4, 1], strides = [1, 1]} : vector<4x8xf32> to vector<4x1xf32>
    %82 = vector.extract_strided_slice %50 {offsets = [0, 6], sizes = [4, 128], strides = [1, 1]} : vector<4x256xf32> to vector<4x128xf32>
    %83 = vector.broadcast %81 : vector<4x1xf32> to vector<4x128xf32>
    %84 = arith.mulf %83, %82 : vector<4x128xf32>
    %85 = arith.addf %80, %84 : vector<4x128xf32>
    %86 = vector.extract_strided_slice %49 {offsets = [0, 7], sizes = [4, 1], strides = [1, 1]} : vector<4x8xf32> to vector<4x1xf32>
    %87 = vector.extract_strided_slice %50 {offsets = [0, 7], sizes = [4, 128], strides = [1, 1]} : vector<4x256xf32> to vector<4x128xf32>
    %88 = vector.broadcast %86 : vector<4x1xf32> to vector<4x128xf32>
    %89 = arith.mulf %88, %87 : vector<4x128xf32>
    %90 = arith.addf %85, %89 : vector<4x128xf32>
    %c0_7 = arith.constant 0 : index
    %c0_8 = arith.constant 0 : index
    %c0_9 = arith.constant 0 : index
    %91 = vector.load %arg5[%c0_7, %c0_8, %c0_9] : memref<1x4x128xf32, #tpu.memory_space<vmem>>, vector<1x4x128xf32>
    %92 = vector.shape_cast %91 : vector<1x4x128xf32> to vector<4x128xf32>
    %93 = vector.shape_cast %90 : vector<4x128xf32> to vector<1x4x128xf32>
    tpu.vector_store %arg5[%c0_7, %c0_8, %c0_9], %93 {strides = array<i32>} : memref<1x4x128xf32, #tpu.memory_space<vmem>>, vector<1x4x128xf32>,
    return
  }
  func.func @transform_0(%arg0: i32, %arg1: i32) -> (i32, i32, i32) {
    %c0_i32 = arith.constant 0 : i32
    %c0_i32_0 = arith.constant 0 : i32
    return %arg0, %c0_i32, %arg1 : i32, i32, i32
  }
  func.func @transform_1(%arg0: i32, %arg1: i32) -> (i32, i32, i32) {
    %c1_i32 = arith.constant 1 : i32
    %0 = arith.addi %arg1, %c1_i32 : i32
    %c1_i32_0 = arith.constant 1 : i32
    %1 = arith.muli %0, %c1_i32_0 : i32
    %c0_i32 = arith.constant 0 : i32
    %c0_i32_1 = arith.constant 0 : i32
    return %arg0, %c0_i32, %1 : i32, i32, i32
  }
  func.func @transform_2(%arg0: i32, %arg1: i32) -> (i32, i32) {
    %c0_i32 = arith.constant 0 : i32
    %c0_i32_0 = arith.constant 0 : i32
    %c0_i32_1 = arith.constant 0 : i32
    return %c0_i32, %c0_i32_0 : i32, i32
  }
  func.func @transform_3(%arg0: i32, %arg1: i32) -> (i32, i32, i32) {
    %c0_i32 = arith.constant 0 : i32
    %c0_i32_0 = arith.constant 0 : i32
    return %arg0, %c0_i32, %arg1 : i32, i32, i32
  }
}

</mosaic_0001>

<llo_original>
// kernel: _forward_impl.1
$region0: #{_forward_impl.1}
  #allocation0 [shape = 'u32[]', space=smem, size = 0x4, offset = 0x4, fixed_abs, tag = 'smem constant byte address 0x4 - core index']
  #allocation1 [shape = 'u32[144,128]{1,0:T(1,128)}', space=vmem, size = 0x12000, scoped, tag = 'internal scratch']
  %s0 = inlined_call_operand.hbm [shape: f32[2,8,256], index: 0, kind: input, shape index: {}, may-alias: {0,1}]
  %s1 = inlined_call_operand.hbm [shape: f32[2,8,256], index: 1, kind: input, shape index: {}, may-alias: {0,1}]
  %s2 = inlined_call_operand.hbm [shape: f32[8,8], index: 2, kind: input, shape index: {}]
  %s3 = inlined_call_operand.hbm [shape: f32[2,4,128], index: 3, kind: output, shape index: {}]
  %s4 = sld [smem:[#allocation0]]
  $region57: #{_forward_impl.1} parent=0
    _
  %s6 = ssub.s32 1, %s4
  %s7 = scalar_select 0, %s6, %s4
  $region1: #{_forward_impl.1} parent=0
    #allocation2 [shape = 'u8[8192]{0}', space=vmem, size = 0x2000, scoped, tag = 'input window, operand 0']
    #allocation3 [shape = 's32[2]{0}', space=sflag, size = 0x8, scoped, tag = 'scoped memory for _forward_impl.1']
    #allocation4 [shape = 's32[2]{0}', space=sflag, size = 0x8, scoped, tag = 'scoped memory for _forward_impl.1']
    #allocation5 [shape = 'u8[8192]{0}', space=vmem, size = 0x2000, scoped, tag = 'input window, operand 1']
    #allocation6 [shape = 's32[2]{0}', space=sflag, size = 0x8, scoped, tag = 'scoped memory for _forward_impl.1']
    #allocation7 [shape = 'u8[4096]{0}', space=vmem, size = 0x1000, scoped, tag = 'input window, operand 2, single buffered']
    #allocation8 [shape = 'u8[4096]{0}', space=vmem, size = 0x1000, scoped, tag = 'output window, operand 0']
    %8 = vsyncpa [#allocation3], 0
    %s9 = scalar_lea.sflag [#allocation3], 1
    %10 = vsyncpa %s9, 0
    %11 = vsyncpa [#allocation6], 0
    %s12 = scalar_lea.sflag [#allocation6], 1
    %13 = vsyncpa %s12, 0
    %14 = vsyncpa [#allocation4], 0
    %s15 = scalar_lea.sflag [#allocation4], 1
    %16 = vsyncpa %s15, 0
    loop: start=0, step=1, limit=4
    $region2: #{_forward_impl.1} parent=1 // loop_pre_header
      _
    $region3: #{_forward_impl.1} parent=1 // loop_header
      %s18 = sphi 0, %s22
      %p19 = scmp.ge.s32.totalorder %s18, 4
      %s25 = sphi 0, %s37
      %s26 = sphi 0, %s33
      %s27 = sphi 0, %s25
      %s28 = sphi 0, %s26
      %s29 = sphi 0, %s27
      %s30 = sphi 0, %s28
      %s42 = sphi 0, %s44
      %s45 = sphi 0, %s42
      %s46 = sphi 0, %s45
      %s62 = sphi 0, %s46
      %s72 = sphi 0, %s74
      %s75 = sphi 0, %s72
      %s76 = sphi 0, %s75
      %s92 = sphi 0, %s76
      %s96 = sphi 0, %s96
      %s98 = sphi 0, %s96
      %s99 = sphi 0, %s98
      %s113 = sphi 0, %s99
      %s121 = sphi 0, %s123
      %s124 = sphi 0, %s121
      %s125 = sphi 0, %s124
      %s141 = sphi 0, %s125
    $region4: #{_forward_impl.1} parent=1 // loop_header_branch
      %21 = sbr.rel (%p19) target = $region8
    $region5: #{_forward_impl.1} parent=1 // loop_body
      %s23 = ssub.s32 %s18, 1
      %s24 = ssub.s32 %s18, 2
      %s31 = sadd.s32 1, %s26
      %p32 = scmp.ge.s32.totalorder %s31, 1
      %s33 = scalar_select %p32, 0, %s31
      %s34 = sadd.s32 1, %s25
      %s35 = scalar_select %p32, %s34, %s25
      %p36 = scmp.ge.s32.totalorder %s35, 2
      %s37 = scalar_select %p36, 0, %s35
      %s38 = ssub.s32 %s25, %s37
      %s39 = ssub.s32 %s26, %s33
      %s40 = sor.u32 %s38, %s39
      %p41 = scmp.eq.s32.totalorder %s40, 0
      %s43 = sadd.s32 %s42, 1
      %s44 = scalar_select %p41, %s42, %s43
      %p47 = pneg %p41
      %p48 = scmp.eq.s32.totalorder %s18, 1
      %p49 = por %p47, %p48
      %p50 = scmp.ne.s32.totalorder %s42, %s45
      %p51 = scmp.eq.s32.totalorder %s18, 0
      %p52 = por %p50, %p51
      %p53 = scmp.ne.s32.totalorder %s42, %s45
      %p54 = scmp.eq.s32.totalorder %s23, 1
      %p55 = por %p53, %p54
      %p56 = scmp.ne.s32.totalorder %s45, %s46
      %p57 = scmp.eq.s32.totalorder %s23, 0
      %p58 = por %p56, %p57
      %p59 = scmp.ne.s32.totalorder %s45, %s46
      %p60 = scmp.eq.s32.totalorder %s24, 1
      %p61 = por %p59, %p60
      %p63 = scmp.ne.s32.totalorder %s46, %s62
      %p64 = scmp.eq.s32.totalorder %s24, 0
      %p65 = por %p63, %p64
      %s66 = sadd.s32 %s26, 1
      %s67 = sadd.s32 %s33, 1
      %s68 = ssub.s32 %s25, %s37
      %s69 = ssub.s32 %s66, %s67
      %s70 = sor.u32 %s68, %s69
      %p71 = scmp.eq.s32.totalorder %s70, 0
      %s73 = sadd.s32 %s72, 1
      %s74 = scalar_select %p71, %s72, %s73
      %p77 = pneg %p71
      %p78 = scmp.eq.s32.totalorder %s18, 1
      %p79 = por %p77, %p78
      %p80 = scmp.ne.s32.totalorder %s72, %s75
      %p81 = scmp.eq.s32.totalorder %s18, 0
      %p82 = por %p80, %p81
      %p83 = scmp.ne.s32.totalorder %s72, %s75
      %p84 = scmp.eq.s32.totalorder %s23, 1
      %p85 = por %p83, %p84
      %p86 = scmp.ne.s32.totalorder %s75, %s76
      %p87 = scmp.eq.s32.totalorder %s23, 0
      %p88 = por %p86, %p87
      %p89 = scmp.ne.s32.totalorder %s75, %s76
      %p90 = scmp.eq.s32.totalorder %s24, 1
      %p91 = por %p89, %p90
      %p93 = scmp.ne.s32.totalorder %s76, %s92
      %p94 = scmp.eq.s32.totalorder %s24, 0
      %p95 = por %p93, %p94
      %s97 = sadd.s32 %s96, 1
      %p100 = scmp.eq.s32.totalorder %s18, 1
      %p101 = scmp.ne.s32.totalorder %s96, %s98
      %p102 = scmp.eq.s32.totalorder %s18, 0
      %p103 = por %p101, %p102
      %p104 = scmp.ne.s32.totalorder %s96, %s98
      %p105 = scmp.eq.s32.totalorder %s23, 1
      %p106 = por %p104, %p105
      %p107 = scmp.ne.s32.totalorder %s98, %s99
      %p108 = scmp.eq.s32.totalorder %s23, 0
      %p109 = por %p107, %p108
      %p110 = scmp.ne.s32.totalorder %s98, %s99
      %p111 = scmp.eq.s32.totalorder %s24, 1
      %p112 = por %p110, %p111
      %p114 = scmp.ne.s32.totalorder %s99, %s113
      %p115 = scmp.eq.s32.totalorder %s24, 0
      %p116 = por %p114, %p115
      %s117 = ssub.s32 %s25, %s37
      %s118 = ssub.s32 %s26, %s33
      %s119 = sor.u32 %s117, %s118
      %p120 = scmp.eq.s32.totalorder %s119, 0
      %s122 = sadd.s32 %s121, 1
      %s123 = scalar_select %p120, %s121, %s122
      %p126 = pneg %p120
      %p127 = scmp.eq.s32.totalorder %s18, 1
      %p128 = por %p126, %p127
      %p129 = scmp.ne.s32.totalorder %s121, %s124
      %p130 = scmp.eq.s32.totalorder %s18, 0
      %p131 = por %p129, %p130
      %p132 = scmp.ne.s32.totalorder %s121, %s124
      %p133 = scmp.eq.s32.totalorder %s23, 1
      %p134 = por %p132, %p133
      %p135 = scmp.ne.s32.totalorder %s124, %s125
      %p136 = scmp.eq.s32.totalorder %s23, 0
      %p137 = por %p135, %p136
      %p138 = scmp.ne.s32.totalorder %s124, %s125
      %p139 = scmp.eq.s32.totalorder %s24, 1
      %p140 = por %p138, %p139
      %p142 = scmp.ne.s32.totalorder %s125, %s141
      %p143 = scmp.eq.s32.totalorder %s24, 0
      %p144 = por %p142, %p143
      %p145 = scmp.le.s32.totalorder 1, %s18
      %p146 = scmp.lt.s32.totalorder %s18, 3
      %p147 = pnand %p145, %p146
      %p148 = pneg %p147
      // Predicated region
      $region9: #{_forward_impl.1} parent=5 // pred_check
        _
      $region10: #{_forward_impl.1} parent=5 // pred_check_branch
        %150 = sbr.rel (%p147) target = $region12
      $region11: #{_forward_impl.1} parent=5 // pred_region
        %s151 = ssub.s32 %s18, 1
        // Predicated region
        $region13: #{_forward_impl.1} parent=11 // pred_check
          %p152 = pneg %p109
        $region14: #{_forward_impl.1} parent=11 // pred_check_branch
          %154 = sbr.rel (%p152) target = $region16
        $region15: #{_forward_impl.1} parent=11 // pred_region
          %s156 = ssub.s32 128, 128
          %157 = vsyncadd [#allocation6], %s156
          %s159 = sshll.u32 [#allocation7], 4
          %s160 = int_to_ptr.vmem [resolvable:$true] %s159
          %162 = dma.hbm_to_vmem [thread:$0]  %s2, 128, %s160, [#allocation6]
        $region16: #{_forward_impl.1} parent=11 // pred_fallthru
          _
      $region12: #{_forward_impl.1} parent=5 // pred_fallthru
        _
      %p163 = scmp.lt.s32.totalorder %s18, 2
      // Predicated region
      $region17: #{_forward_impl.1} parent=5 // pred_check
        %p164 = pneg %p163
      $region18: #{_forward_impl.1} parent=5 // pred_check_branch
        %166 = sbr.rel (%p164) target = $region20
      $region19: #{_forward_impl.1} parent=5 // pred_region
        // Predicated region
        $region21: #{_forward_impl.1} parent=19 // pred_check
          %p167 = pneg %p52
        $region22: #{_forward_impl.1} parent=19 // pred_check_branch
          %169 = sbr.rel (%p167) target = $region24
        $region23: #{_forward_impl.1} parent=19 // pred_region
          %s170 = sand.u32 %s42, 1
          %s171 = scalar_lea.sflag [#allocation3], %s170
          %s172 = sand.u32 %s42, 1
          %s173 = smul.addr %s172, 8
          %s174 = scalar_lea.vmem [#allocation2], %s173
          %s176 = ssub.s32 128, 128
          %177 = vsyncadd %s171, %s176
          %s178 = smul.addr %s25, 2
          %s179 = sadd.s32 %s26, %s178
          %s180 = smul.addr %s179, 128
          %s181 = scalar_lea.hbm %s0, %s180
          %s183 = sshll.u32 %s174, 4
          %s184 = int_to_ptr.vmem [resolvable:$true] %s183
          %186 = dma.hbm_to_vmem [thread:$0]  %s181, 128, %s184, %s171
        $region24: #{_forward_impl.1} parent=19 // pred_fallthru
          _
        // Predicated region
        $region25: #{_forward_impl.1} parent=19 // pred_check
          %p187 = pneg %p82
        $region26: #{_forward_impl.1} parent=19 // pred_check_branch
          %189 = sbr.rel (%p187) target = $region28
        $region27: #{_forward_impl.1} parent=19 // pred_region
          %s190 = sand.u32 %s18, 1
          %s191 = scalar_lea.sflag [#allocation6], %s190
          %s192 = sand.u32 %s72, 1
          %s193 = smul.addr %s192, 8
          %s194 = scalar_lea.vmem [#allocation5], %s193
          %s195 = sadd.s32 %s26, 1
          %s197 = ssub.s32 128, 128
          %198 = vsyncadd %s191, %s197
          %s199 = smul.addr %s25, 2
          %s200 = sadd.s32 %s195, %s199
          %s201 = smul.addr %s200, 128
          %s202 = scalar_lea.hbm %s1, %s201
          %s204 = sshll.u32 %s194, 4
          %s205 = int_to_ptr.vmem [resolvable:$true] %s204
          %207 = dma.hbm_to_vmem [thread:$0]  %s202, 128, %s205, %s191
        $region28: #{_forward_impl.1} parent=19 // pred_fallthru
          _
      $region20: #{_forward_impl.1} parent=5 // pred_fallthru
        _
      %p208 = scmp.le.s32.totalorder 1, %s18
      %p209 = scmp.lt.s32.totalorder %s18, 3
      %p210 = pnand %p208, %p209
      %p211 = pneg %p210
      // Predicated region
      $region29: #{_forward_impl.1} parent=5 // pred_check
        _
      $region30: #{_forward_impl.1} parent=5 // pred_check_branch
        %213 = sbr.rel (%p210) target = $region32
      $region31: #{_forward_impl.1} parent=5 // pred_region
        %s214 = ssub.s32 %s18, 1
        %s215 = sand.u32 %s45, 1
        %s216 = scalar_lea.sflag [#allocation3], %s215
        %s217 = sand.u32 %s45, 1
        %s218 = smul.addr %s217, 8
        %s219 = scalar_lea.vmem [#allocation2], %s218
        // Predicated region
        $region33: #{_forward_impl.1} parent=31 // pred_check
          %p220 = pneg %p58
        $region34: #{_forward_impl.1} parent=31 // pred_check_branch
          %222 = sbr.rel (%p220) target = $region36
        $region35: #{_forward_impl.1} parent=31 // pred_region
          %223 = dma.done %s216, 128
        $region36: #{_forward_impl.1} parent=31 // pred_fallthru
          _
        %s224 = sand.u32 %s23, 1
        %s225 = scalar_lea.sflag [#allocation6], %s224
        %s226 = sand.u32 %s75, 1
        %s227 = smul.addr %s226, 8
        %s228 = scalar_lea.vmem [#allocation5], %s227
        // Predicated region
        $region37: #{_forward_impl.1} parent=31 // pred_check
          %p229 = pneg %p88
        $region38: #{_forward_impl.1} parent=31 // pred_check_branch
          %231 = sbr.rel (%p229) target = $region40
        $region39: #{_forward_impl.1} parent=31 // pred_region
          %232 = dma.done %s225, 128
        $region40: #{_forward_impl.1} parent=31 // pred_fallthru
          _
        // Predicated region
        $region41: #{_forward_impl.1} parent=31 // pred_check
          %p233 = pneg %p109
        $region42: #{_forward_impl.1} parent=31 // pred_check_branch
          %235 = sbr.rel (%p233) target = $region44
        $region43: #{_forward_impl.1} parent=31 // pred_region
          %236 = dma.done [#allocation6], 128
        $region44: #{_forward_impl.1} parent=31 // pred_fallthru
          _
        %s237 = sand.u32 %s45, 1
        %s238 = scalar_lea.sflag [#allocation3], %s237
        %s239 = sand.u32 %s45, 1
        %s240 = smul.addr %s239, 8
        %s241 = scalar_lea.vmem [#allocation2], %s240
        %p242 = pneg %p58
        %p243 = pneg %p55
        %s244 = sand.u32 %s23, 1
        %s245 = scalar_lea.sflag [#allocation6], %s244
        %s246 = sand.u32 %s75, 1
        %s247 = smul.addr %s246, 8
        %s248 = scalar_lea.vmem [#allocation5], %s247
        %p249 = pneg %p88
        %p250 = pneg %p85
        %p251 = pneg %p109
        %p252 = pneg %p106
        %p253 = pneg %p137
        %p254 = pneg %p134
        %s255 = sand.u32 %s124, 1
        %s256 = scalar_lea.sflag [#allocation4], %s255
        %s257 = sand.u32 %s124, 1
        %s258 = smul.addr %s257, 4
        %s259 = scalar_lea.vmem [#allocation8], %s258
        %s260 = sadd.s32 %s28, 1
        %v261 = vld [vmem:[%s219] sm:$0xff]
        %v262 = vld [vmem:[%s228] sm:$0xff]
        %v263 = vld [vmem:[#allocation7] sm:$0xff]
        %265 = vset.pattern.permute.xlu0 0
        %266 = vperm.xlu0 %265, %v263
        %v267 = vpop.permute.xlu0 %266
        %v269 = vmul.f32 %v267, %v261
        %v270 = vadd.f32 %v269, 0.0
        %271 = vset.pattern.permute.xlu0 1
        %272 = vperm.xlu0 %271, %v263
        %v273 = vpop.permute.xlu0 %272
        %v275 = vmul.f32 %v273, %v261
        %v276 = vmul.f32 %v273, %v262
        %279 = vrot.lane.b32.xlu0 %v275, 127
        %v280 = vpop.permute.xlu0 %279
        %281 = vrot.lane.b32.xlu0 %v276, 127
        %v282 = vpop.permute.xlu0 %281
        %vm283 = vcmask 1039360
        %v284 = vsel %vm283, %v280, %v282
        %v286 = vadd.f32 %v270, %v284
        %287 = vset.pattern.permute.xlu0 2
        %288 = vperm.xlu0 %287, %v263
        %v289 = vpop.permute.xlu0 %288
        %v291 = vmul.f32 %v289, %v261
        %v292 = vmul.f32 %v289, %v262
        %295 = vrot.lane.b32.xlu0 %v291, 126
        %v296 = vpop.permute.xlu0 %295
        %297 = vrot.lane.b32.xlu0 %v292, 126
        %v298 = vpop.permute.xlu0 %297
        %vm299 = vcmask 1031168
        %v300 = vsel %vm299, %v296, %v298
        %v302 = vadd.f32 %v286, %v300
        %303 = vset.pattern.permute.xlu0 3
        %304 = vperm.xlu0 %303, %v263
        %v305 = vpop.permute.xlu0 %304
        %v307 = vmul.f32 %v305, %v261
        %v308 = vmul.f32 %v305, %v262
        %311 = vrot.lane.b32.xlu0 %v307, 125
        %v312 = vpop.permute.xlu0 %311
        %313 = vrot.lane.b32.xlu0 %v308, 125
        %v314 = vpop.permute.xlu0 %313
        %vm315 = vcmask 1022976
        %v316 = vsel %vm315, %v312, %v314
        %v318 = vadd.f32 %v302, %v316
        %319 = vset.pattern.permute.xlu0 4
        %320 = vperm.xlu0 %319, %v263
        %v321 = vpop.permute.xlu0 %320
        %v323 = vmul.f32 %v321, %v261
        %v324 = vmul.f32 %v321, %v262
        %327 = vrot.lane.b32.xlu0 %v323, 124
        %v328 = vpop.permute.xlu0 %327
        %329 = vrot.lane.b32.xlu0 %v324, 124
        %v330 = vpop.permute.xlu0 %329
        %vm331 = vcmask 1014784
        %v332 = vsel %vm331, %v328, %v330
        %v334 = vadd.f32 %v318, %v332
        %335 = vset.pattern.permute.xlu0 5
        %336 = vperm.xlu0 %335, %v263
        %v337 = vpop.permute.xlu0 %336
        %v339 = vmul.f32 %v337, %v261
        %v340 = vmul.f32 %v337, %v262
        %343 = vrot.lane.b32.xlu0 %v339, 123
        %v344 = vpop.permute.xlu0 %343
        %345 = vrot.lane.b32.xlu0 %v340, 123
        %v346 = vpop.permute.xlu0 %345
        %vm347 = vcmask 1006592
        %v348 = vsel %vm347, %v344, %v346
        %v350 = vadd.f32 %v334, %v348
        %351 = vset.pattern.permute.xlu0 6
        %352 = vperm.xlu0 %351, %v263
        %v353 = vpop.permute.xlu0 %352
        %v355 = vmul.f32 %v353, %v261
        %v356 = vmul.f32 %v353, %v262
        %359 = vrot.lane.b32.xlu0 %v355, 122
        %v360 = vpop.permute.xlu0 %359
        %361 = vrot.lane.b32.xlu0 %v356, 122
        %v362 = vpop.permute.xlu0 %361
        %vm363 = vcmask 998400
        %v364 = vsel %vm363, %v360, %v362
        %v366 = vadd.f32 %v350, %v364
        %367 = vset.pattern.permute.xlu0 7
        %368 = vperm.xlu0 %367, %v263
        %v369 = vpop.permute.xlu0 %368
        %v371 = vmul.f32 %v369, %v261
        %v372 = vmul.f32 %v369, %v262
        %375 = vrot.lane.b32.xlu0 %v371, 121
        %v376 = vpop.permute.xlu0 %375
        %377 = vrot.lane.b32.xlu0 %v372, 121
        %v378 = vpop.permute.xlu0 %377
        %vm379 = vcmask 990208
        %v380 = vsel %vm379, %v376, %v378
        %v382 = vadd.f32 %v366, %v380
        %v384 = vrot.slane %v269, 4
        %v386 = vadd.f32 %v382, %v384
        %v387 = vrot.slane %v275, 4
        %v388 = vrot.slane %v276, 4
        %389 = vrot.lane.b32.xlu0 %v387, 127
        %v390 = vpop.permute.xlu0 %389
        %391 = vrot.lane.b32.xlu0 %v388, 127
        %v392 = vpop.permute.xlu0 %391
        %v393 = vsel %vm283, %v390, %v392
        %v395 = vadd.f32 %v386, %v393
        %v396 = vrot.slane %v291, 4
        %v397 = vrot.slane %v292, 4
        %398 = vrot.lane.b32.xlu0 %v396, 126
        %v399 = vpop.permute.xlu0 %398
        %400 = vrot.lane.b32.xlu0 %v397, 126
        %v401 = vpop.permute.xlu0 %400
        %v402 = vsel %vm299, %v399, %v401
        %v404 = vadd.f32 %v395, %v402
        %v405 = vrot.slane %v307, 4
        %v406 = vrot.slane %v308, 4
        %407 = vrot.lane.b32.xlu0 %v405, 125
        %v408 = vpop.permute.xlu0 %407
        %409 = vrot.lane.b32.xlu0 %v406, 125
        %v410 = vpop.permute.xlu0 %409
        %v411 = vsel %vm315, %v408, %v410
        %v413 = vadd.f32 %v404, %v411
        %v414 = vrot.slane %v323, 4
        %v415 = vrot.slane %v324, 4
        %416 = vrot.lane.b32.xlu0 %v414, 124
        %v417 = vpop.permute.xlu0 %416
        %418 = vrot.lane.b32.xlu0 %v415, 124
        %v419 = vpop.permute.xlu0 %418
        %v420 = vsel %vm331, %v417, %v419
        %v422 = vadd.f32 %v413, %v420
        %v423 = vrot.slane %v339, 4
        %v424 = vrot.slane %v340, 4
        %425 = vrot.lane.b32.xlu0 %v423, 123
        %v426 = vpop.permute.xlu0 %425
        %427 = vrot.lane.b32.xlu0 %v424, 123
        %v428 = vpop.permute.xlu0 %427
        %v429 = vsel %vm347, %v426, %v428
        %v431 = vadd.f32 %v422, %v429
        %v432 = vrot.slane %v355, 4
        %v433 = vrot.slane %v356, 4
        %434 = vrot.lane.b32.xlu0 %v432, 122
        %v435 = vpop.permute.xlu0 %434
        %436 = vrot.lane.b32.xlu0 %v433, 122
        %v437 = vpop.permute.xlu0 %436
        %v438 = vsel %vm363, %v435, %v437
        %v440 = vadd.f32 %v431, %v438
        %v441 = vrot.slane %v371, 4
        %v442 = vrot.slane %v372, 4
        %443 = vrot.lane.b32.xlu0 %v441, 121
        %v444 = vpop.permute.xlu0 %443
        %445 = vrot.lane.b32.xlu0 %v442, 121
        %v446 = vpop.permute.xlu0 %445
        %v447 = vsel %vm379, %v444, %v446
        %v449 = vadd.f32 %v440, %v447
        %450 = vst [vmem:[%s259] sm:$0xf] %v449
        %s451 = sand.u32 %s124, 1
        %s452 = scalar_lea.sflag [#allocation4], %s451
        %s453 = sand.u32 %s124, 1
        %s454 = smul.addr %s453, 4
        %s455 = scalar_lea.vmem [#allocation8], %s454
        // Predicated region
        $region45: #{_forward_impl.1} parent=31 // pred_check
          %p456 = pneg %p134
        $region46: #{_forward_impl.1} parent=31 // pred_check_branch
          %458 = sbr.rel (%p456) target = $region48
        $region47: #{_forward_impl.1} parent=31 // pred_region
          %s460 = ssub.s32 64, 64
          %461 = vsyncadd %s452, %s460
          %s462 = sadd.s32 %s28, %s27
          %s463 = smul.addr %s462, 64
          %s464 = scalar_lea.hbm %s3, %s463
          %s466 = sshll.u32 %s455, 4
          %s467 = int_to_ptr.vmem [resolvable:$true] %s466
          %469 = dma.vmem_to_hbm [thread:$0]  %s467, 64, %s464, %s452
        $region48: #{_forward_impl.1} parent=31 // pred_fallthru
          _
      $region32: #{_forward_impl.1} parent=5 // pred_fallthru
        _
      %p470 = scmp.le.s32.totalorder 2, %s18
      // Predicated region
      $region49: #{_forward_impl.1} parent=5 // pred_check
        %p471 = pneg %p470
      $region50: #{_forward_impl.1} parent=5 // pred_check_branch
        %473 = sbr.rel (%p471) target = $region52
      $region51: #{_forward_impl.1} parent=5 // pred_region
        %s474 = ssub.s32 %s18, 2
        // Predicated region
        $region53: #{_forward_impl.1} parent=51 // pred_check
          %p475 = pneg %p140
        $region54: #{_forward_impl.1} parent=51 // pred_check_branch
          %477 = sbr.rel (%p475) target = $region56
        $region55: #{_forward_impl.1} parent=51 // pred_region
          %s478 = sand.u32 %s125, 1
          %s479 = scalar_lea.sflag [#allocation4], %s478
          %s480 = sand.u32 %s125, 1
          %s481 = smul.addr %s480, 4
          %s482 = scalar_lea.vmem [#allocation8], %s481
          %483 = dma.done %s479, 64
        $region56: #{_forward_impl.1} parent=51 // pred_fallthru
          _
      $region52: #{_forward_impl.1} parent=5 // pred_fallthru
        _
    $region6: #{_forward_impl.1} parent=1 // loop_footer
      %s22 = sadd.s32 1, %s18
    $region7: #{_forward_impl.1} parent=1 // loop_footer_branch
      %17 = sbr.rel target = $region3
    $region8: #{_forward_impl.1} parent=1 // loop_exit
      _
    %484 = vsyncpa [#allocation3], 1
    %s485 = scalar_lea.sflag [#allocation3], 1
    %486 = vsyncpa %s485, 1
    %487 = vsyncpa [#allocation6], 1
    %s488 = scalar_lea.sflag [#allocation6], 1
    %489 = vsyncpa %s488, 1
    %490 = vsyncpa [#allocation4], 1
    %s491 = scalar_lea.sflag [#allocation4], 1
    %492 = vsyncpa %s491, 1

</llo_original>
